<compile_context>
chip_gen: v5e
topology: v5e:2x2
jax: 0.10.0
libtpu: 0.0.40
codegen_flags: <defaults>
</compile_context>

<pallas_src>
import jax
import jax.numpy as jnp
from jax.experimental import pallas as pl
from jax.experimental.pallas import tpu as pltpu


def _round_up(x, m):
    return ((x + m - 1) // m) * m


def _position_column(tile):
    """(tile, 1) float32 absolute positions for the current grid step."""
    row0 = pl.program_id(0) * tile
    pos_i32 = row0 + jax.lax.broadcasted_iota(jnp.int32, (tile, 1), 0)
    return pos_i32.astype(jnp.float32)


def _sincos_split_kernel(inv_freq_ref, cos_ref, sin_ref):
    """dim >= 128 path: two lane-dense (tile, dim) outputs."""
    tile = cos_ref.shape[0]
    pos = _position_column(tile)                       # (tile, 1) f32
    freqs = pos * inv_freq_ref[...]                    # (tile, half) outer product
    c = jnp.cos(freqs)                                 # EUP on half width only
    s = jnp.sin(freqs)
    # Duplicate in vregs and do ONE full-width store per output (no masked
    # half-slice stores on the store slot).
    cos_ref[...] = jnp.concatenate([c, c], axis=-1).astype(cos_ref.dtype)
    sin_ref[...] = jnp.concatenate([s, s], axis=-1).astype(sin_ref.dtype)


def _sincos_packed_kernel(inv_freq_ref, out_ref):
    """dim < 128 path: one packed (tile, 2*dim) output = [cos|cos|sin|sin]."""
    tile = out_ref.shape[0]
    pos = _position_column(tile)
    freqs = pos * inv_freq_ref[...]
    c = jnp.cos(freqs)
    s = jnp.sin(freqs)
    out_ref[...] = jnp.concatenate([c, c, s, s], axis=-1).astype(out_ref.dtype)


def sinusoidal_embeddings(x, dim, base=10000.0, seq_dim=1, seq_tile=1024,
                          out_dtype=jnp.float32):
    """Rotary sinusoidal tables. Returns (cos, sin), each (seq_len, 1, dim)."""
    assert dim % 2 == 0, "rotary dim must be even (dim == 2 * half)"
    seq_len = x.shape[seq_dim]
    half = dim // 2

    # Same math as the torch module's registered buffer.
    inv_freq = 1.0 / (base ** (jnp.arange(0, dim, 2, dtype=jnp.float32) / dim))
    inv_freq = inv_freq.reshape(1, half)

    # Sequence tiling:
    #  * long sequences: fixed seq_tile (multiple of 8, ~1-2 MiB VMEM/step);
    #  * mid sequences (fit in one tile): split into >=2 multiple-of-8 tiles
    #    so both v7x TensorCores get work under the "parallel" axis;
    #  * tiny sequences: a single full-array block (always layout-legal).
    seq_tile = _round_up(max(int(seq_tile), 8), 8)
    if seq_len > seq_tile:
        tile = seq_tile
    elif seq_len >= 16:
        tile = _round_up(pl.cdiv(seq_len, 2), 8)
    else:
        tile = seq_len
    grid = (pl.cdiv(seq_len, tile),)

    # inv_freq: constant index map -> DMA'd once, resident across grid steps.
    in_specs = [pl.BlockSpec((1, half), lambda i: (0, 0))]
    bytes_per_elt = jnp.dtype(out_dtype).itemsize
    cost = pl.CostEstimate(
        flops=seq_len * dim,
        transcendentals=seq_len * dim,
        bytes_accessed=2 * seq_len * dim * bytes_per_elt,
    )
    cparams = pltpu.CompilerParams(dimension_semantics=("parallel",))

    if dim < 128:
        # Pack cos|sin along lanes so the output block is as lane-dense as
        # possible and there is one writeback DMA per tile; split in wrapper.
        packed = pl.pallas_call(
            _sincos_packed_kernel,
            out_shape=jax.ShapeDtypeStruct((seq_len, 2 * dim), out_dtype),
            grid=grid,
            in_specs=in_specs,
            out_specs=pl.BlockSpec((tile, 2 * dim), lambda i: (i, 0)),
            compiler_params=cparams,
            cost_estimate=cost,
        )(inv_freq)
        cos = packed[:, None, :dim]
        sin = packed[:, None, dim:]
        return cos, sin

    cos, sin = pl.pallas_call(
        _sincos_split_kernel,
        out_shape=(
            jax.ShapeDtypeStruct((seq_len, dim), out_dtype),
            jax.ShapeDtypeStruct((seq_len, dim), out_dtype),
        ),
        grid=grid,
        in_specs=in_specs,
        out_specs=(
            pl.BlockSpec((tile, dim), lambda i: (i, 0)),
            pl.BlockSpec((tile, dim), lambda i: (i, 0)),
        ),
        compiler_params=cparams,
        cost_estimate=cost,
    )(inv_freq)

    # Match torch: emb.cos()[:, None, :], emb.sin()[:, None, :].
    # (torch's seq_len_cached host cache is subsumed by jit's per-shape cache.)
    return cos[:, None, :], sin[:, None, :]


def _reference(seq, dim, base=10000.0):
    inv_freq = 1.0 / (base ** (jnp.arange(0, dim, 2, dtype=jnp.float32) / dim))
    t = jnp.arange(seq, dtype=jnp.float32)
    freqs = jnp.einsum("i,j->ij", t, inv_freq)
    emb = jnp.concatenate([freqs, freqs], axis=-1)
    return jnp.cos(emb)[:, None, :], jnp.sin(emb)[:, None, :]


if __name__ == "__main__":
    key = jax.random.PRNGKey(0)

    # 1) Small case matching the module's input layout [batch, seq, dim]
    #    (dim < 128 -> packed output path, single tile).
    batch, seq, dim = 2, 8, 32
    x = jax.random.normal(key, (batch, seq, dim), dtype=jnp.float32)
    cos, sin = sinusoidal_embeddings(x, dim=dim, base=10000.0, seq_dim=1)
    jax.block_until_ready((cos, sin))
    ref_cos, ref_sin = _reference(seq, dim)
    assert cos.shape == (seq, 1, dim) and sin.shape == (seq, 1, dim)
    assert jnp.allclose(cos, ref_cos, atol=1e-5, rtol=1e-5)
    assert jnp.allclose(sin, ref_sin, atol=1e-5, rtol=1e-5)

    # 2) dim >= 128 split-output path with >=2 grid steps and a partial last
    #    block (validates the program_id position offset + padding path).
    seq2, dim2 = 520, 128
    x2 = jax.random.normal(key, (1, seq2, dim2), dtype=jnp.float32)
    cos2, sin2 = sinusoidal_embeddings(x2, dim=dim2, base=10000.0, seq_dim=1)
    jax.block_until_ready((cos2, sin2))
    ref_cos2, ref_sin2 = _reference(seq2, dim2)
    assert cos2.shape == (seq2, 1, dim2) and sin2.shape == (seq2, 1, dim2)
    # Large-angle f32 range reduction may differ from XLA by ~1e-4.
    assert jnp.allclose(cos2, ref_cos2, atol=1e-3, rtol=1e-3)
    assert jnp.allclose(sin2, ref_sin2, atol=1e-3, rtol=1e-3)

    # 3) Long sequence exercising the seq_tile=1024 multi-step packed path
    #    (head_dim 64, partial last tile of 8 rows).
    seq3, dim3 = 2056, 64
    x3 = jax.random.normal(key, (1, seq3, dim3), dtype=jnp.float32)
    cos3, sin3 = sinusoidal_embeddings(x3, dim=dim3, base=10000.0, seq_dim=1)
    jax.block_until_ready((cos3, sin3))
    ref_cos3, ref_sin3 = _reference(seq3, dim3)
    assert cos3.shape == (seq3, 1, dim3) and sin3.shape == (seq3, 1, dim3)
    assert jnp.allclose(cos3, ref_cos3, atol=1e-3, rtol=1e-3)
    assert jnp.allclose(sin3, ref_sin3, atol=1e-3, rtol=1e-3)

    print("KERNEL_OK")
</pallas_src>

<mosaic_0001>
module attributes {stable_mosaic.version = 11 : i64} {
  func.func @_sincos_packed_kernel(%arg0: i32, %arg1: memref<1x16xf32, #tpu.memory_space<vmem>>, %arg2: memref<8x64xf32, #tpu.memory_space<vmem>>) attributes {dimension_semantics = [#tpu.dimension_semantics<parallel>], iteration_bounds = array<i64: 1>, scalar_prefetch = 0 : i64, scratch_operands = 0 : i64, tpu.core_type = #tpu.core_type<tc>, window_params = [{pipeline_mode = #tpu.pipeline_mode<synchronous>, transform_indices = @transform_0, window_bounds = array<i64: 1, 16>}, {transform_indices = @transform_1, window_bounds = array<i64: 8, 64>}]} {
    %c8_i32 = arith.constant 8 : i32
    %0 = arith.muli %arg0, %c8_i32 : i32
    %1 = tpu.iota {dimensions = array<i32: 0>} : vector<8x1xi32>
    %2 = vector.broadcast %0 : i32 to vector<8x1xi32>
    %3 = arith.addi %2, %1 : vector<8x1xi32>
    %4 = arith.sitofp %3 : vector<8x1xi32> to vector<8x1xf32>
    %c0 = arith.constant 0 : index
    %c0_0 = arith.constant 0 : index
    %5 = vector.load %arg1[%c0, %c0_0] : memref<1x16xf32, #tpu.memory_space<vmem>>, vector<1x16xf32>
    %6 = vector.broadcast %4 : vector<8x1xf32> to vector<8x16xf32>
    %7 = vector.broadcast %5 : vector<1x16xf32> to vector<8x16xf32>
    %8 = arith.mulf %6, %7 : vector<8x16xf32>
    %9 = math.cos %8 : vector<8x16xf32>
    %10 = math.sin %8 : vector<8x16xf32>
    %11 = tpu.concatenate %9, %9, %10, %10 in 1 : vector<8x16xf32>, vector<8x16xf32>, vector<8x16xf32>, vector<8x16xf32> -> vector<8x64xf32>
    %c0_1 = arith.constant 0 : index
    %c0_2 = arith.constant 0 : index
    %12 = vector.load %arg2[%c0_1, %c0_2] : memref<8x64xf32, #tpu.memory_space<vmem>>, vector<8x64xf32>
    tpu.vector_store %arg2[%c0_1, %c0_2], %11 {strides = array<i32>} : memref<8x64xf32, #tpu.memory_space<vmem>>, vector<8x64xf32>,
    return
  }
  func.func @transform_0(%arg0: i32) -> (i32, i32) {
    %c0_i32 = arith.constant 0 : i32
    %c0_i32_0 = arith.constant 0 : i32
    %c0_i32_1 = arith.constant 0 : i32
    return %c0_i32, %c0_i32_0 : i32, i32
  }
  func.func @transform_1(%arg0: i32) -> (i32, i32) {
    %c0_i32 = arith.constant 0 : i32
    %c0_i32_0 = arith.constant 0 : i32
    return %arg0, %c0_i32 : i32, i32
  }
}

</mosaic_0001>

<llo_original>
// kernel: tpu_custom_call.1
$region0: #{tpu_custom_call.1}
  #allocation0 [shape = 'u32[]', space=smem, size = 0x4, offset = 0x4, fixed_abs, tag = 'smem constant byte address 0x4 - core index']
  #allocation1 [shape = 'u32[72,128]{1,0:T(1,128)}', space=vmem, size = 0x9000, scoped, tag = 'internal scratch']
  %s0 = inlined_call_operand.hbm [shape: f32[1,16], index: 0, kind: input, shape index: {}]
  %s1 = inlined_call_operand.hbm [shape: f32[8,64], index: 1, kind: output, shape index: {}]
  %s2 = sld [smem:[#allocation0]]
  $region18: #{tpu_custom_call.1} parent=0
    _
  %s4 = ssub.s32 1, %s2
  %s5 = scalar_select 0, %s4, %s2
  $region1: #{tpu_custom_call.1} parent=0
    #allocation2 [shape = 'u8[512]{0}', space=vmem, size = 0x400, scoped, tag = 'input window, operand 0, single buffered']
    #allocation3 [shape = 's32[1]{0}', space=sflag, size = 0x4, scoped, tag = 'scoped memory for tpu_custom_call.1']
    #allocation4 [shape = 's32[1]{0}', space=sflag, size = 0x4, scoped, tag = 'scoped memory for tpu_custom_call.1']
    #allocation5 [shape = 'u8[4096]{0}', space=vmem, size = 0x1000, scoped, tag = 'output window, operand 0, single buffered']
    %6 = vsyncpa [#allocation3], 0
    %7 = vsyncpa [#allocation4], 0
    // Predicated region
    $region2: #{tpu_custom_call.1} parent=1 // pred_check
      _
    $region3: #{tpu_custom_call.1} parent=1 // pred_check_branch
      %9 = sbr.rel (0) target = $region5
    $region4: #{tpu_custom_call.1} parent=1 // pred_region
      %11 = vsyncadd [#allocation3], 0
      %s13 = sshll.u32 %s0, 4
      %s14 = int_to_ptr.hbm [resolvable:$true] %s13
      %s15 = sshll.u32 [#allocation2], 4
      %s16 = int_to_ptr.vmem [resolvable:$true] %s15
      %18 = dma.hbm_to_vmem [thread:$0]  %s14, 16, %s16, [#allocation3]
    $region5: #{tpu_custom_call.1} parent=1 // pred_fallthru
      _
    // Predicated region
    $region6: #{tpu_custom_call.1} parent=1 // pred_check
      _
    $region7: #{tpu_custom_call.1} parent=1 // pred_check_branch
      %20 = sbr.rel (0) target = $region9
    $region8: #{tpu_custom_call.1} parent=1 // pred_region
      %22 = dma.done [#allocation3], 16
    $region9: #{tpu_custom_call.1} parent=1 // pred_fallthru
      _
    %s23 = smul.u32 0, 8
    %v24 = vlaneseq
    %v25 = vshrl.u32 %v24, 7
    %v26 = vstv %s23
    %v27 = vadd.s32 %v26, %v25
    %v28 = vcvt.s32.f32 %v27
    %v29 = vld [vmem:[#allocation2] sm:$0x1]
    %v31 = vperm.slane %v29, 0
    %v33 = vmul.f32 %v28, %v31
    %v34 = vand.u32 2147483647, %v33
    %vm35 = vcmp.le.f32.partialorder %v34, 0.7853982
    %vm36 = vcmp.lt.s32.totalorder %v33, 0
    %v37 = vand.u32 %v33, 2139095040
    %v38 = vshrl.u32 %v37, 23
    %v39 = vsub.s32 %v38, 127
    %v40 = vand.u32 2147483647, %v33
    %v41 = vand.u32 %v40, 8388607
    %v42 = vor.u32 %v41, 8388608
    %v43 = vsub.s32 0, %v42
    %v44 = vadd.s32 %v39, 1
    %vm45 = vcmp.gt.s32.totalorder %v44, 0
    %v46 = vsel %vm45, %v44, 0
    %v47 = vshrl.u32 %v46, 5
    %v48 = vand.u32 %v46, 31
    %v49 = vsub.s32 32, %v48
    %v50 = vshrl.u32 683565275, %v49
    %v51 = vshll.u32 683565275, %v48
    %v52 = vshrl.u32 2475754826, %v49
    %v53 = vor.u32 %v51, %v52
    %v54 = vshll.u32 2475754826, %v48
    %v55 = vshrl.u32 2131351028, %v49
    %v56 = vor.u32 %v54, %v55
    %v57 = vshll.u32 2131351028, %v48
    %v58 = vshrl.u32 2102212464, %v49
    %v59 = vor.u32 %v57, %v58
    %v60 = vshll.u32 2102212464, %v48
    %v61 = vshrl.u32 920167782, %v49
    %v62 = vor.u32 %v60, %v61
    %v63 = vshll.u32 920167782, %v48
    %v64 = vshrl.u32 1326507024, %v49
    %v65 = vor.u32 %v63, %v64
    %vm66 = vcmp.lt.s32.totalorder %v47, 1
    %vm67 = vcmp.lt.s32.totalorder %v47, 2
    %vm68 = vcmp.lt.s32.totalorder %v47, 3
    %vm69 = vcmp.lt.s32.totalorder %v47, 4
    %v70 = vsel %vm66, %v50, %v53
    %v71 = vsel %vm69, %v59, 2102212464
    %v72 = vsel %vm68, %v56, %v71
    %v73 = vsel %vm67, %v70, %v72
    %v74 = vsel %vm66, %v53, %v56
    %v75 = vsel %vm69, %v62, 920167782
    %v76 = vsel %vm68, %v59, %v75
    %v77 = vsel %vm67, %v74, %v76
    %v78 = vsel %vm66, %v56, %v59
    %v79 = vsel %vm69, %v65, 1326507024
    %v80 = vsel %vm68, %v62, %v79
    %v81 = vsel %vm67, %v78, %v80
    %v82 = vshll.u32 %v42, 8
    %v83 = vand.u32 %v82, 65535
    %v84 = vshrl.u32 %v82, 16
    %v85 = vand.u32 %v81, 65535
    %v86 = vshrl.u32 %v81, 16
    %v87 = vmul.u32 %v83, %v85
    %v88 = vmul.u32 %v83, %v86
    %v89 = vmul.u32 %v84, %v85
    %v90 = vmul.u32 %v84, %v86
    %v91 = vshll.u32 %v88, 16
    %v92 = vshrl.u32 %v88, 16
    %v93 = vshll.u32 %v89, 16
    %v94 = vshrl.u32 %v89, 16
    %vm95 = vc.u32 %v87, %v91
    %v96 = vsel %vm95, 1, 0
    %v97 = vadd.s32 %v87, %v91
    %v98 = vadd.s32 %v90, %v96
    %vm99 = vc.u32 %v97, %v93
    %v100 = vsel %vm99, 1, 0
    %v101 = vadd.s32 %v97, %v93
    %v102 = vadd.s32 %v98, %v100
    %v103 = vadd.s32 %v102, %v92
    %v104 = vadd.s32 %v103, %v94
    %v105 = vand.u32 %v82, 65535
    %v106 = vshrl.u32 %v82, 16
    %v107 = vand.u32 %v77, 65535
    %v108 = vshrl.u32 %v77, 16
    %v109 = vmul.u32 %v105, %v107
    %v110 = vmul.u32 %v105, %v108
    %v111 = vmul.u32 %v106, %v107
    %v112 = vmul.u32 %v106, %v108
    %v113 = vshll.u32 %v110, 16
    %v114 = vshrl.u32 %v110, 16
    %v115 = vshll.u32 %v111, 16
    %v116 = vshrl.u32 %v111, 16
    %vm117 = vc.u32 %v109, %v113
    %v118 = vsel %vm117, 1, 0
    %v119 = vadd.s32 %v109, %v113
    %v120 = vadd.s32 %v112, %v118
    %vm121 = vc.u32 %v119, %v115
    %v122 = vsel %vm121, 1, 0
    %v123 = vadd.s32 %v119, %v115
    %v124 = vadd.s32 %v120, %v122
    %v125 = vadd.s32 %v124, %v114
    %v126 = vadd.s32 %v125, %v116
    %v127 = vmul.u32 %v82, %v73
    %v128 = vadd.s32 %v104, %v123
    %vm129 = vc.u32 %v104, %v123
    %v130 = vadd.s32 %v126, 1
    %v131 = vsel %vm129, %v130, %v126
    %v132 = vadd.s32 %v127, %v131
    %v133 = vadd.s32 %v132, 536870912
    %v134 = vshrl.u32 %v133, 30
    %v135 = vshll.u32 %v134, 30
    %v136 = vsub.s32 %v132, %v135
    %vm137 = vcmp.lt.s32.totalorder %v136, 0
    %v138 = vsub.s32 0, %v136
    %v139 = vsel %vm137, %v138, %v136
    %v140 = vclz %v139
    %v141 = vsub.s32 %v140, 2
    %vm142 = vcmp.gt.s32.totalorder 0, %v141
    %v143 = vsel %vm142, 0, %v141
    %v144 = vsub.s32 32, %v143
    %v145 = vshll.u32 %v136, %v143
    %v146 = vshrl.u32 %v128, %v144
    %v147 = vor.u32 %v145, %v146
    %v148 = vsub.s32 4294967266, %v143
    %v149 = vadd.s32 %v148, 127
    %v150 = vshll.u32 %v149, 23
    %v151 = vor.u32 4788187, %v150
    %v152 = vand.u32 2147483647, %v151
    %v154 = vcvt.s32.f32 %v147
    %v155 = vmul.f32 %v154, %v152
    %v156 = vxor.u32 %v155, 2147483648
    %v157 = vsel %vm36, %v156, %v155
    %v158 = vsub.s32 4, %v134
    %v159 = vsel %vm36, %v158, %v134
    %v160 = vsel %vm35, %v33, %v157
    %v161 = vsel %vm35, 0, %v159
    %v162 = vmul.f32 %v160, %v160
    %v163 = vmul.f32 %v162, -0.001358992
    %v164 = vadd.f32 %v163, 0.041655596
    %v165 = vmul.f32 %v162, %v164
    %v166 = vadd.f32 %v165, -0.4999988
    %v167 = vmul.f32 %v162, %v166
    %v168 = vadd.f32 1.0, %v167
    %v169 = vmul.f32 %v160, %v160
    %v170 = vmul.f32 %v169, -0.00019511016
    %v171 = vadd.f32 %v170, 0.008332121
    %v172 = vmul.f32 %v169, %v171
    %v173 = vadd.f32 %v172, -0.16666654
    %v174 = vmul.f32 %v169, %v173
    %v175 = vadd.f32 %v174, 1.0
    %v176 = vmul.f32 %v175, %v160
    %vm177 = vweird.f32 %v33
    %v178 = vand.u32 %v161, 3
    %vm179 = vcmp.lt.s32.totalorder %v178, 2
    %vm180 = vcmp.eq.s32.totalorder %v178, 0
    %v181 = vxor.u32 %v176, 2147483648
    %v182 = vsel %vm180, %v168, %v181
    %vm183 = vcmp.eq.s32.totalorder %v178, 2
    %v184 = vxor.u32 %v168, 2147483648
    %v185 = vsel %vm183, %v184, %v176
    %v186 = vsel %vm179, %v182, %v185
    %v187 = vsel %vm177, nan, %v186
    %v188 = vand.u32 2147483647, %v33
    %vm189 = vcmp.le.f32.partialorder %v188, 0.7853982
    %vm190 = vcmp.lt.s32.totalorder %v33, 0
    %v191 = vand.u32 %v33, 2139095040
    %v192 = vshrl.u32 %v191, 23
    %v193 = vsub.s32 %v192, 127
    %v194 = vand.u32 2147483647, %v33
    %v195 = vand.u32 %v194, 8388607
    %v196 = vor.u32 %v195, 8388608
    %v197 = vsub.s32 0, %v196
    %v198 = vadd.s32 %v193, 1
    %vm199 = vcmp.gt.s32.totalorder %v198, 0
    %v200 = vsel %vm199, %v198, 0
    %v201 = vshrl.u32 %v200, 5
    %v202 = vand.u32 %v200, 31
    %v203 = vsub.s32 32, %v202
    %v204 = vshrl.u32 683565275, %v203
    %v205 = vshll.u32 683565275, %v202
    %v206 = vshrl.u32 2475754826, %v203
    %v207 = vor.u32 %v205, %v206
    %v208 = vshll.u32 2475754826, %v202
    %v209 = vshrl.u32 2131351028, %v203
    %v210 = vor.u32 %v208, %v209
    %v211 = vshll.u32 2131351028, %v202
    %v212 = vshrl.u32 2102212464, %v203
    %v213 = vor.u32 %v211, %v212
    %v214 = vshll.u32 2102212464, %v202
    %v215 = vshrl.u32 920167782, %v203
    %v216 = vor.u32 %v214, %v215
    %v217 = vshll.u32 920167782, %v202
    %v218 = vshrl.u32 1326507024, %v203
    %v219 = vor.u32 %v217, %v218
    %vm220 = vcmp.lt.s32.totalorder %v201, 1
    %vm221 = vcmp.lt.s32.totalorder %v201, 2
    %vm222 = vcmp.lt.s32.totalorder %v201, 3
    %vm223 = vcmp.lt.s32.totalorder %v201, 4
    %v224 = vsel %vm220, %v204, %v207
    %v225 = vsel %vm223, %v213, 2102212464
    %v226 = vsel %vm222, %v210, %v225
    %v227 = vsel %vm221, %v224, %v226
    %v228 = vsel %vm220, %v207, %v210
    %v229 = vsel %vm223, %v216, 920167782
    %v230 = vsel %vm222, %v213, %v229
    %v231 = vsel %vm221, %v228, %v230
    %v232 = vsel %vm220, %v210, %v213
    %v233 = vsel %vm223, %v219, 1326507024
    %v234 = vsel %vm222, %v216, %v233
    %v235 = vsel %vm221, %v232, %v234
    %v236 = vshll.u32 %v196, 8
    %v237 = vand.u32 %v236, 65535
    %v238 = vshrl.u32 %v236, 16
    %v239 = vand.u32 %v235, 65535
    %v240 = vshrl.u32 %v235, 16
    %v241 = vmul.u32 %v237, %v239
    %v242 = vmul.u32 %v237, %v240
    %v243 = vmul.u32 %v238, %v239
    %v244 = vmul.u32 %v238, %v240
    %v245 = vshll.u32 %v242, 16
    %v246 = vshrl.u32 %v242, 16
    %v247 = vshll.u32 %v243, 16
    %v248 = vshrl.u32 %v243, 16
    %vm249 = vc.u32 %v241, %v245
    %v250 = vsel %vm249, 1, 0
    %v251 = vadd.s32 %v241, %v245
    %v252 = vadd.s32 %v244, %v250
    %vm253 = vc.u32 %v251, %v247
    %v254 = vsel %vm253, 1, 0
    %v255 = vadd.s32 %v251, %v247
    %v256 = vadd.s32 %v252, %v254
    %v257 = vadd.s32 %v256, %v246
    %v258 = vadd.s32 %v257, %v248
    %v259 = vand.u32 %v236, 65535
    %v260 = vshrl.u32 %v236, 16
    %v261 = vand.u32 %v231, 65535
    %v262 = vshrl.u32 %v231, 16
    %v263 = vmul.u32 %v259, %v261
    %v264 = vmul.u32 %v259, %v262
    %v265 = vmul.u32 %v260, %v261
    %v266 = vmul.u32 %v260, %v262
    %v267 = vshll.u32 %v264, 16
    %v268 = vshrl.u32 %v264, 16
    %v269 = vshll.u32 %v265, 16
    %v270 = vshrl.u32 %v265, 16
    %vm271 = vc.u32 %v263, %v267
    %v272 = vsel %vm271, 1, 0
    %v273 = vadd.s32 %v263, %v267
    %v274 = vadd.s32 %v266, %v272
    %vm275 = vc.u32 %v273, %v269
    %v276 = vsel %vm275, 1, 0
    %v277 = vadd.s32 %v273, %v269
    %v278 = vadd.s32 %v274, %v276
    %v279 = vadd.s32 %v278, %v268
    %v280 = vadd.s32 %v279, %v270
    %v281 = vmul.u32 %v236, %v227
    %v282 = vadd.s32 %v258, %v277
    %vm283 = vc.u32 %v258, %v277
    %v284 = vadd.s32 %v280, 1
    %v285 = vsel %vm283, %v284, %v280
    %v286 = vadd.s32 %v281, %v285
    %v287 = vadd.s32 %v286, 536870912
    %v288 = vshrl.u32 %v287, 30
    %v289 = vshll.u32 %v288, 30
    %v290 = vsub.s32 %v286, %v289
    %vm291 = vcmp.lt.s32.totalorder %v290, 0
    %v292 = vsub.s32 0, %v290
    %v293 = vsel %vm291, %v292, %v290
    %v294 = vclz %v293
    %v295 = vsub.s32 %v294, 2
    %vm296 = vcmp.gt.s32.totalorder 0, %v295
    %v297 = vsel %vm296, 0, %v295
    %v298 = vsub.s32 32, %v297
    %v299 = vshll.u32 %v290, %v297
    %v300 = vshrl.u32 %v282, %v298
    %v301 = vor.u32 %v299, %v300
    %v302 = vsub.s32 4294967266, %v297
    %v303 = vadd.s32 %v302, 127
    %v304 = vshll.u32 %v303, 23
    %v305 = vor.u32 4788187, %v304
    %v306 = vand.u32 2147483647, %v305
    %v308 = vcvt.s32.f32 %v301
    %v309 = vmul.f32 %v308, %v306
    %v310 = vxor.u32 %v309, 2147483648
    %v311 = vsel %vm190, %v310, %v309
    %v312 = vsub.s32 4, %v288
    %v313 = vsel %vm190, %v312, %v288
    %v314 = vsel %vm189, %v33, %v311
    %v315 = vsel %vm189, 0, %v313
    %v316 = vmul.f32 %v314, %v314
    %v317 = vmul.f32 %v316, -0.001358992
    %v318 = vadd.f32 %v317, 0.041655596
    %v319 = vmul.f32 %v316, %v318
    %v320 = vadd.f32 %v319, -0.4999988
    %v321 = vmul.f32 %v316, %v320
    %v322 = vadd.f32 1.0, %v321
    %v323 = vmul.f32 %v314, %v314
    %v324 = vmul.f32 %v323, -0.00019511016
    %v325 = vadd.f32 %v324, 0.008332121
    %v326 = vmul.f32 %v323, %v325
    %v327 = vadd.f32 %v326, -0.16666654
    %v328 = vmul.f32 %v323, %v327
    %v329 = vadd.f32 %v328, 1.0
    %v330 = vmul.f32 %v329, %v314
    %vm331 = vweird.f32 %v33
    %v332 = vadd.s32 %v315, 3
    %v333 = vand.u32 %v332, 3
    %vm334 = vcmp.lt.s32.totalorder %v333, 2
    %vm335 = vcmp.eq.s32.totalorder %v333, 0
    %v336 = vxor.u32 %v330, 2147483648
    %v337 = vsel %vm335, %v322, %v336
    %vm338 = vcmp.eq.s32.totalorder %v333, 2
    %v339 = vxor.u32 %v322, 2147483648
    %v340 = vsel %vm338, %v339, %v330
    %v341 = vsel %vm334, %v337, %v340
    %v342 = vsel %vm331, nan, %v341
    %344 = vrot.lane.b32.xlu0 %v187, 16
    %v345 = vpop.permute.xlu0 %344
    %348 = vrot.lane.b32.xlu0 %v342, 32
    %v349 = vpop.permute.xlu0 %348
    %351 = vrot.lane.b32.xlu0 %v342, 48
    %v352 = vpop.permute.xlu0 %351
    %vm354 = vcmask 130048
    %v355 = vsel %vm354, %v187, %v345
    %vm356 = vcmask 261120
    %v357 = vsel %vm356, %v355, %v349
    %vm358 = vcmask 392192
    %v359 = vsel %vm358, %v357, %v352
    %vm360 = vcmask 523264
    %361 = vst.msk [vmem:[#allocation5] sm:$0xff] %vm360, %v359
    // Predicated region
    $region10: #{tpu_custom_call.1} parent=1 // pred_check
      _
    $region11: #{tpu_custom_call.1} parent=1 // pred_check_branch
      %363 = sbr.rel (0) target = $region13
    $region12: #{tpu_custom_call.1} parent=1 // pred_region
      %365 = vsyncadd [#allocation4], 0
      %s367 = sshll.u32 [#allocation5], 4
      %s368 = int_to_ptr.vmem [resolvable:$true] %s367
      %s369 = sshll.u32 %s1, 4
      %s370 = int_to_ptr.hbm [resolvable:$true] %s369
      %372 = dma.vmem_to_hbm [thread:$0]  %s368, 128, %s370, [#allocation4]
    $region13: #{tpu_custom_call.1} parent=1 // pred_fallthru
      _
    // Predicated region
    $region14: #{tpu_custom_call.1} parent=1 // pred_check
      _
    $region15: #{tpu_custom_call.1} parent=1 // pred_check_branch
      %374 = sbr.rel (0) target = $region17
    $region16: #{tpu_custom_call.1} parent=1 // pred_region
      %376 = dma.done [#allocation4], 128
    $region17: #{tpu_custom_call.1} parent=1 // pred_fallthru
      _
    %377 = vsyncpa [#allocation3], 1
    %378 = vsyncpa [#allocation4], 1

</llo_original>
